<compile_context>
chip_gen: v6e
topology: v6e:2x2x1
jax: 0.10.0
libtpu: 0.0.40
codegen_flags: <defaults>
</compile_context>

<pallas_src>
import math

import jax
import jax.numpy as jnp
from jax.experimental import pallas as pl
from jax.experimental.pallas import tpu as pltpu


def _pe_add_kernel(x_ref, pe_ref, o_ref):
    # x_ref / o_ref: (b_tile, lane_tile); pe_ref: (1, lane_tile) -> broadcast
    # over the batch rows.  Purely mem-bound elementwise add.
    o_ref[...] = x_ref[...] + pe_ref[...]


def make_position_encoding_table(d_model, max_len=600, dtype=jnp.float32):
    """Host-side build of the sinusoidal table, matching the PyTorch __init__.

    Build it once (per dtype) at model-init time and reuse across calls.
    """
    assert d_model % 2 == 0, "reference PositionEncoding assumes even d_model"
    position = jnp.arange(0.0, max_len, dtype=jnp.float32)[:, None]          # (L, 1)
    div_term = jnp.exp(
        jnp.arange(0.0, d_model, 2, dtype=jnp.float32)
        * (-(math.log(10000.0) / d_model))
    )                                                                         # (C/2,)
    angles = position * div_term                                              # (L, C/2)
    pe = jnp.zeros((max_len, d_model), dtype=jnp.float32)
    pe = pe.at[:, 0::2].set(jnp.sin(angles))
    pe = pe.at[:, 1::2].set(jnp.cos(angles))
    return pe.astype(dtype)


def _round_up(v, m):
    return ((v + m - 1) // m) * m


def position_encoding_forward(x, pe_table):
    """x: (B, T, C); pe_table: (max_len, C).  Returns x + pe[:T] (eval mode)."""
    B, T, C = x.shape
    max_len, d_model = pe_table.shape
    assert T <= max_len and C == d_model

    if pe_table.dtype != x.dtype:
        # Tiny (max_len, C) one-off cast; prefer building the table in the
        # model dtype via make_position_encoding_table(..., dtype=...).
        # Note: PyTorch instead promotes (adds in f32, then casts), so for
        # bf16 activations results differ by one rounding step.
        pe_table = pe_table.astype(x.dtype)

    # Flatten (T, C) -> one lane-dense axis of N elements (row-major, so the
    # add is position-preserving and the flatten is exact).
    N = T * C
    Lc = max_len * C
    x_flat = x.reshape(B, N)                 # free reshape (contiguous)
    pe_flat = pe_table.reshape(1, Lc)        # free reshape; no per-call slice

    # Lane tile: big multiple of 128 for dense, unmasked vst; padded edge
    # blocks (and the pe table extending past T*C) are harmless because output
    # writes are masked against the real (B, N) bounds.
    LANE_TILE_MAX = 4096
    lane_tile = min(LANE_TILE_MAX, _round_up(N, 128))
    n_lane = pl.cdiv(N, lane_tile)

    # Batch tile: full extent if B <= 8 (legal), otherwise a multiple of 8.
    # Double-buffered footprint ~= 2*(2*b_tile + 1)*lane_tile*itemsize
    # <= ~4.2 MiB for f32 -> fits every generation's default scoped VMEM.
    b_tile = B if B <= 8 else min(64, (B // 8) * 8)
    n_b = pl.cdiv(B, b_tile)

    # Batch is the LAST (innermost / fastest-varying) grid axis, so the pe
    # block index is constant across it and Pallas reuses the pe tile instead
    # of re-DMA'ing it once per batch block.
    grid = (n_lane, n_b)

    out_flat = pl.pallas_call(
        _pe_add_kernel,
        out_shape=jax.ShapeDtypeStruct((B, N), x.dtype),
        grid_spec=pltpu.PrefetchScalarGridSpec(
            num_scalar_prefetch=0,
            grid=grid,
            in_specs=[
                # x: one (b_tile, lane_tile) block per (lane, batch) grid step.
                pl.BlockSpec((b_tile, lane_tile), lambda l, b: (b, l)),
                # pe: (1, lane_tile) block; index_map ignores the batch axis ->
                # reused across the inner batch loop (no refetch, no expanded
                # (B, T, C) table ever touches HBM).
                pl.BlockSpec((1, lane_tile), lambda l, b: (0, l)),
            ],
            out_specs=pl.BlockSpec((b_tile, lane_tile), lambda l, b: (b, l)),
        ),
        compiler_params=pltpu.CompilerParams(
            # Both axes independent -> shard across TensorCores on v7x;
            # harmless on single-core v5e/v6e.
            dimension_semantics=("parallel", "parallel"),
        ),
        # input_output_aliases={0: 0} would write the sum back into x's buffer;
        # only enable it when x is donated at the jit boundary, otherwise XLA
        # inserts a defensive copy (extra traffic).
    )(x_flat, pe_flat)

    return out_flat.reshape(B, T, C)


if __name__ == "__main__":
    # Small deterministic example consistent with the module: x of shape (B, T, C).
    B, T, C = 2, 16, 32
    max_len = 600
    dropout_p = 0.1  # identity at eval

    key = jax.random.PRNGKey(0)
    x = jax.random.normal(key, (B, T, C), dtype=jnp.float32)

    pe_table = make_position_encoding_table(C, max_len=max_len, dtype=jnp.float32)

    out = position_encoding_forward(x, pe_table)
    out = jax.block_until_ready(out)

    # Pure-JAX reference check (eval mode: dropout == identity).
    ref = x + pe_table[:T][None, :, :]
    assert out.shape == (B, T, C)
    assert jnp.allclose(out, ref, atol=1e-6, rtol=1e-6), "mismatch vs reference"

    print("KERNEL_OK")
</pallas_src>

<mosaic_0001>
module attributes {stable_mosaic.version = 11 : i64} {
  func.func @_pe_add_kernel(%arg0: i32, %arg1: i32, %arg2: memref<2x512xf32, #tpu.memory_space<vmem>>, %arg3: memref<1x512xf32, #tpu.memory_space<vmem>>, %arg4: memref<2x512xf32, #tpu.memory_space<vmem>>) attributes {dimension_semantics = [#tpu.dimension_semantics<parallel>, #tpu.dimension_semantics<parallel>], iteration_bounds = array<i64: 1, 1>, scalar_prefetch = 0 : i64, scratch_operands = 0 : i64, tpu.core_type = #tpu.core_type<tc>, window_params = [{transform_indices = @transform_0, window_bounds = array<i64: 2, 512>}, {transform_indices = @transform_1, window_bounds = array<i64: 1, 512>}, {transform_indices = @transform_2, window_bounds = array<i64: 2, 512>}]} {
    %c0 = arith.constant 0 : index
    %c0_0 = arith.constant 0 : index
    %0 = vector.load %arg2[%c0, %c0_0] : memref<2x512xf32, #tpu.memory_space<vmem>>, vector<2x512xf32>
    %c0_1 = arith.constant 0 : index
    %c0_2 = arith.constant 0 : index
    %1 = vector.load %arg3[%c0_1, %c0_2] : memref<1x512xf32, #tpu.memory_space<vmem>>, vector<1x512xf32>
    %2 = vector.broadcast %1 : vector<1x512xf32> to vector<2x512xf32>
    %3 = arith.addf %0, %2 : vector<2x512xf32>
    %c0_3 = arith.constant 0 : index
    %c0_4 = arith.constant 0 : index
    %4 = vector.load %arg4[%c0_3, %c0_4] : memref<2x512xf32, #tpu.memory_space<vmem>>, vector<2x512xf32>
    tpu.vector_store %arg4[%c0_3, %c0_4], %3 {strides = array<i32>} : memref<2x512xf32, #tpu.memory_space<vmem>>, vector<2x512xf32>,
    return
  }
  func.func @transform_0(%arg0: i32, %arg1: i32) -> (i32, i32) {
    %c0_i32 = arith.constant 0 : i32
    return %arg1, %arg0 : i32, i32
  }
  func.func @transform_1(%arg0: i32, %arg1: i32) -> (i32, i32) {
    %c0_i32 = arith.constant 0 : i32
    %c0_i32_0 = arith.constant 0 : i32
    return %c0_i32, %arg0 : i32, i32
  }
  func.func @transform_2(%arg0: i32, %arg1: i32) -> (i32, i32) {
    %c0_i32 = arith.constant 0 : i32
    return %arg1, %arg0 : i32, i32
  }
}

</mosaic_0001>

<llo_original>
// kernel: tpu_custom_call.1
$region0: #{tpu_custom_call.1}
  #allocation0 [shape = 'u32[]', space=smem, size = 0x4, offset = 0x4, fixed_abs, tag = 'smem constant byte address 0x4 - core index']
  #allocation1 [shape = 'u32[144,128]{1,0:T(1,128)}', space=vmem, size = 0x12000, scoped, tag = 'internal scratch']
  %s0 = inlined_call_operand.hbm [shape: f32[2,512], index: 0, kind: input, shape index: {}]
  %s1 = inlined_call_operand.hbm [shape: f32[1,19200], index: 1, kind: input, shape index: {}]
  %s2 = inlined_call_operand.hbm [shape: f32[2,512], index: 2, kind: output, shape index: {}]
  %s3 = sld [smem:[#allocation0]]
  $region26: #{tpu_custom_call.1} parent=0
    _
  %s5 = ssub.s32 1, %s3
  %s6 = scalar_select 0, %s5, %s3
  $region1: #{tpu_custom_call.1} parent=0
    #allocation2 [shape = 'u8[4096]{0}', space=vmem, size = 0x1000, scoped, tag = 'input window, operand 0, single buffered']
    #allocation3 [shape = 's32[1]{0}', space=sflag, size = 0x4, scoped, tag = 'scoped memory for tpu_custom_call.1']
    #allocation4 [shape = 's32[1]{0}', space=sflag, size = 0x4, scoped, tag = 'scoped memory for tpu_custom_call.1']
    #allocation5 [shape = 'u8[2048]{0}', space=vmem, size = 0x800, scoped, tag = 'input window, operand 1, single buffered']
    #allocation6 [shape = 's32[1]{0}', space=sflag, size = 0x4, scoped, tag = 'scoped memory for tpu_custom_call.1']
    #allocation7 [shape = 'u8[4096]{0}', space=vmem, size = 0x1000, scoped, tag = 'output window, operand 0, single buffered']
    %7 = vsyncpa [#allocation3], 0
    %8 = vsyncpa [#allocation6], 0
    %9 = vsyncpa [#allocation4], 0
    // Predicated region
    $region2: #{tpu_custom_call.1} parent=1 // pred_check
      _
    $region3: #{tpu_custom_call.1} parent=1 // pred_check_branch
      %11 = sbr.rel (0) target = $region5
    $region4: #{tpu_custom_call.1} parent=1 // pred_region
      %s13 = ssub.s32 128, 128
      %14 = vsyncadd [#allocation3], %s13
      %s16 = sshll.u32 [#allocation2], 4
      %s17 = int_to_ptr.vmem [resolvable:$true] %s16
      %19 = dma.hbm_to_vmem [thread:$0]  %s0, 128, %s17, [#allocation3]
    $region5: #{tpu_custom_call.1} parent=1 // pred_fallthru
      _
    // Predicated region
    $region6: #{tpu_custom_call.1} parent=1 // pred_check
      _
    $region7: #{tpu_custom_call.1} parent=1 // pred_check_branch
      %21 = sbr.rel (0) target = $region9
    $region8: #{tpu_custom_call.1} parent=1 // pred_region
      %s23 = ssub.s32 64, 64
      %24 = vsyncadd [#allocation6], %s23
      %s26 = sshll.u32 [#allocation5], 4
      %s27 = int_to_ptr.vmem [resolvable:$true] %s26
      %29 = dma.hbm_to_vmem [thread:$0]  %s1, 64, %s27, [#allocation6]
    $region9: #{tpu_custom_call.1} parent=1 // pred_fallthru
      _
    // Predicated region
    $region10: #{tpu_custom_call.1} parent=1 // pred_check
      _
    $region11: #{tpu_custom_call.1} parent=1 // pred_check_branch
      %31 = sbr.rel (0) target = $region13
    $region12: #{tpu_custom_call.1} parent=1 // pred_region
      %32 = dma.done [#allocation3], 128
    $region13: #{tpu_custom_call.1} parent=1 // pred_fallthru
      _
    // Predicated region
    $region14: #{tpu_custom_call.1} parent=1 // pred_check
      _
    $region15: #{tpu_custom_call.1} parent=1 // pred_check_branch
      %34 = sbr.rel (0) target = $region17
    $region16: #{tpu_custom_call.1} parent=1 // pred_region
      %35 = dma.done [#allocation6], 64
    $region17: #{tpu_custom_call.1} parent=1 // pred_fallthru
      _
    %v36 = vld [vmem:[#allocation2] sm:$0xff]
    %v37 = vld [vmem:[#allocation5] sm:$0xf]
    %v39 = vlaneseq
    %v40 = vshrl.u32 %v39, 7
    %v41 = vsub.s32 0, %v40
    %v42 = vrot.slane %v37, %v41
    %v43 = vlaneseq
    %v44 = vshrl.u32 %v43, 7
    %v45 = vsub.s32 1, %v44
    %v46 = vrot.slane %v37, %v45
    %v47 = vlaneseq
    %v48 = vshrl.u32 %v47, 7
    %v49 = vsub.s32 2, %v48
    %v50 = vrot.slane %v37, %v49
    %v51 = vlaneseq
    %v52 = vshrl.u32 %v51, 7
    %v53 = vsub.s32 3, %v52
    %v54 = vrot.slane %v37, %v53
    %v55 = vcombine.low %v42, %v46
    %v56 = vcombine.low %v50, %v54
    %v58 = vunpack.c.l.s4 1983009808
    %v59 = vunpack.c.0.s8 %v58
    %v60 = vlaneseq
    %v61 = vshrl.u32 %v60, 7
    %v62 = vsub.s32 %v59, %v61
    %v63 = vrot.slane %v55, %v62
    %v65 = vunpack.c.l.s4 1983009808
    %v66 = vunpack.c.0.s8 %v65
    %v67 = vlaneseq
    %v68 = vshrl.u32 %v67, 7
    %v69 = vsub.s32 %v66, %v68
    %v70 = vrot.slane %v56, %v69
    %v71 = vcombine.low %v63, %v70
    %v73 = vadd.f32 %v36, %v71
    %74 = vst [vmem:[#allocation7] sm:$0xff] %v73
    // Predicated region
    $region18: #{tpu_custom_call.1} parent=1 // pred_check
      _
    $region19: #{tpu_custom_call.1} parent=1 // pred_check_branch
      %76 = sbr.rel (0) target = $region21
    $region20: #{tpu_custom_call.1} parent=1 // pred_region
      %s78 = ssub.s32 128, 128
      %79 = vsyncadd [#allocation4], %s78
      %s81 = sshll.u32 [#allocation7], 4
      %s82 = int_to_ptr.vmem [resolvable:$true] %s81
      %84 = dma.vmem_to_hbm [thread:$0]  %s82, 128, %s2, [#allocation4]
    $region21: #{tpu_custom_call.1} parent=1 // pred_fallthru
      _
    // Predicated region
    $region22: #{tpu_custom_call.1} parent=1 // pred_check
      _
    $region23: #{tpu_custom_call.1} parent=1 // pred_check_branch
      %86 = sbr.rel (0) target = $region25
    $region24: #{tpu_custom_call.1} parent=1 // pred_region
      %87 = dma.done [#allocation4], 128
    $region25: #{tpu_custom_call.1} parent=1 // pred_fallthru
      _
    %88 = vsyncpa [#allocation3], 1
    %89 = vsyncpa [#allocation6], 1
    %90 = vsyncpa [#allocation4], 1

</llo_original>
